<compile_context>
chip_gen: v7x
topology: tpu7x:2x2x1
jax: 0.10.0
libtpu: 0.0.40
codegen_flags: <defaults>
</compile_context>

<pallas_src>
import jax
import jax.numpy as jnp
from jax.experimental import pallas as pl
from jax.experimental.pallas import tpu as pltpu


def mlp_kernel(x_ref, w1_ref, b1_ref, w2_ref, b2_ref, w3_ref, b3_ref, o_ref):
    # Layer 1: Linear(768 -> 128) + ReLU   (bf16 MXU matmul, f32 accumulate)
    h1 = jnp.dot(x_ref[...], w1_ref[...], preferred_element_type=jnp.float32)
    h1 = jnp.maximum(h1 + b1_ref[...], 0.0).astype(w2_ref.dtype)
    # Layer 2: Linear(128 -> 64[padded 128]) + ReLU
    h2 = jnp.dot(h1, w2_ref[...], preferred_element_type=jnp.float32)
    h2 = jnp.maximum(h2 + b2_ref[...], 0.0).astype(w3_ref.dtype)
    # Layer 3: Linear(64 -> 3[padded 128])  (logits, no activation); lane-dense store.
    out = jnp.dot(h2, w3_ref[...], preferred_element_type=jnp.float32)
    o_ref[...] = (out + b3_ref[...]).astype(o_ref.dtype)


def protein_classifier_forward(x, params, *, tb=128):
    """Forward pass. x: (B, in_dim) float32. Returns (B, out_dim) float32 logits."""
    w1, b1, w2, b2, w3, b3 = params
    B, in_dim = x.shape
    out_dim = w3.shape[1]

    H1 = w1.shape[1]      # 128
    H2 = w2.shape[1]      # 64
    H2P = 128             # hidden-2 padded to full lane width
    OUTP = 128            # logits padded to full lane width (unmasked stores)

    # bf16 weights (halve HBM weight bytes); biases stay f32 (added post-accum).
    w1b = w1.astype(jnp.bfloat16)
    w2b = jnp.zeros((H1, H2P), jnp.bfloat16).at[:, :H2].set(w2.astype(jnp.bfloat16))
    b2p = jnp.zeros((1, H2P), jnp.float32).at[:, :H2].set(b2)
    w3b = jnp.zeros((H2P, OUTP), jnp.bfloat16).at[:H2, :out_dim].set(w3.astype(jnp.bfloat16))
    b3p = jnp.zeros((1, OUTP), jnp.float32).at[:, :out_dim].set(b3)
    b1f = b1.astype(jnp.float32)

    # Batch tiling: pad B up to a multiple of tb; extra rows are sliced off below.
    nb = pl.cdiv(B, tb)
    Bp = nb * tb
    xb = x.astype(jnp.bfloat16)
    if Bp != B:
        xb = jnp.pad(xb, ((0, Bp - B), (0, 0)))

    flops = 2 * Bp * (in_dim * H1 + H1 * H2P + H2P * OUTP)
    bytes_accessed = (
        xb.size * 2                                  # bf16 activations in
        + (w1b.size + w2b.size + w3b.size) * 2       # bf16 weights
        + (b1f.size + b2p.size + b3p.size) * 4       # f32 biases
        + Bp * OUTP * 4                              # f32 logits out
    )

    def const(arr):
        return pl.BlockSpec(arr.shape, lambda i: (0,) * arr.ndim)

    out = pl.pallas_call(
        mlp_kernel,
        out_shape=jax.ShapeDtypeStruct((Bp, OUTP), jnp.float32),
        grid_spec=pltpu.PrefetchScalarGridSpec(
            num_scalar_prefetch=0,
            grid=(nb,),
            in_specs=[
                pl.BlockSpec((tb, in_dim), lambda i: (i, 0)),   # x: tiled over batch
                const(w1b), const(b1f),                         # weights: VMEM-resident
                const(w2b), const(b2p),
                const(w3b), const(b3p),
            ],
            out_specs=pl.BlockSpec((tb, OUTP), lambda i: (i, 0)),
        ),
        compiler_params=pltpu.CompilerParams(
            dimension_semantics=("parallel",),   # megacore sharding on v7x
        ),
        cost_estimate=pl.CostEstimate(
            flops=flops, transcendentals=0, bytes_accessed=bytes_accessed),
    )(xb, w1b, b1f, w2b, b2p, w3b, b3p)

    return out[:B, :out_dim]


def init_params(key, in_dim=768, hidden_dim=128, out_dim=3):
    """Deterministic init mirroring nn.Linear's U(-1/sqrt(fan_in), 1/sqrt(fan_in))."""
    ks = jax.random.split(key, 6)

    def linear(kw, kb, fan_in, fan_out):
        bound = 1.0 / (fan_in ** 0.5)
        w = jax.random.uniform(kw, (fan_in, fan_out), jnp.float32, -bound, bound)
        b = jax.random.uniform(kb, (1, fan_out), jnp.float32, -bound, bound)
        return w, b

    w1, b1 = linear(ks[0], ks[1], in_dim, hidden_dim)
    w2, b2 = linear(ks[2], ks[3], hidden_dim, 64)
    w3, b3 = linear(ks[4], ks[5], 64, out_dim)
    return (w1, b1, w2, b2, w3, b3)


def reference_forward_f32(x, params):
    w1, b1, w2, b2, w3, b3 = params
    h1 = jnp.maximum(x @ w1 + b1, 0.0)
    h2 = jnp.maximum(h1 @ w2 + b2, 0.0)
    return h2 @ w3 + b3


def reference_forward_bf16(x, params):
    """Mirrors the kernel's numerics: bf16 operands, f32 accumulation, f32 bias."""
    w1, b1, w2, b2, w3, b3 = params
    xb = x.astype(jnp.bfloat16)
    h1 = jnp.dot(xb, w1.astype(jnp.bfloat16), preferred_element_type=jnp.float32) + b1
    h1 = jnp.maximum(h1, 0.0).astype(jnp.bfloat16)
    h2 = jnp.dot(h1, w2.astype(jnp.bfloat16), preferred_element_type=jnp.float32) + b2
    h2 = jnp.maximum(h2, 0.0).astype(jnp.bfloat16)
    return jnp.dot(h2, w3.astype(jnp.bfloat16), preferred_element_type=jnp.float32) + b3


if __name__ == "__main__":
    key = jax.random.PRNGKey(0)
    k_params, k_x = jax.random.split(key)

    B, IN_DIM, HIDDEN, OUT = 8, 768, 128, 3
    params = init_params(k_params, IN_DIM, HIDDEN, OUT)
    x = jax.random.normal(k_x, (B, IN_DIM), dtype=jnp.float32)

    out = protein_classifier_forward(x, params)
    out = jax.block_until_ready(out)
    assert out.shape == (B, OUT)

    # Tight check against a reference that mirrors the kernel's bf16/f32 numerics.
    ref_bf16 = jax.block_until_ready(reference_forward_bf16(x, params))
    assert jnp.allclose(out, ref_bf16, atol=2e-2, rtol=2e-2), "mismatch vs bf16 reference"

    # Looser sanity check against the full-f32 reference.
    ref_f32 = jax.block_until_ready(reference_forward_f32(x, params))
    assert jnp.allclose(out, ref_f32, atol=5e-2, rtol=5e-2), "mismatch vs f32 reference"

    print("KERNEL_OK")
</pallas_src>

<mosaic_0001>
module attributes {stable_mosaic.version = 11 : i64} {
  func.func @mlp_kernel(%arg0: i32, %arg1: memref<128x768xbf16, #tpu.memory_space<vmem>>, %arg2: memref<768x128xbf16, #tpu.memory_space<vmem>>, %arg3: memref<1x128xf32, #tpu.memory_space<vmem>>, %arg4: memref<128x128xbf16, #tpu.memory_space<vmem>>, %arg5: memref<1x128xf32, #tpu.memory_space<vmem>>, %arg6: memref<128x128xbf16, #tpu.memory_space<vmem>>, %arg7: memref<1x128xf32, #tpu.memory_space<vmem>>, %arg8: memref<128x128xf32, #tpu.memory_space<vmem>>) attributes {dimension_semantics = [#tpu.dimension_semantics<parallel>], iteration_bounds = array<i64: 1>, scalar_prefetch = 0 : i64, scratch_operands = 0 : i64, tpu.core_type = #tpu.core_type<tc>, window_params = [{transform_indices = @transform_0, window_bounds = array<i64: 128, 768>}, {pipeline_mode = #tpu.pipeline_mode<synchronous>, transform_indices = @transform_1, window_bounds = array<i64: 768, 128>}, {pipeline_mode = #tpu.pipeline_mode<synchronous>, transform_indices = @transform_2, window_bounds = array<i64: 1, 128>}, {pipeline_mode = #tpu.pipeline_mode<synchronous>, transform_indices = @transform_3, window_bounds = array<i64: 128, 128>}, {pipeline_mode = #tpu.pipeline_mode<synchronous>, transform_indices = @transform_4, window_bounds = array<i64: 1, 128>}, {pipeline_mode = #tpu.pipeline_mode<synchronous>, transform_indices = @transform_5, window_bounds = array<i64: 128, 128>}, {pipeline_mode = #tpu.pipeline_mode<synchronous>, transform_indices = @transform_6, window_bounds = array<i64: 1, 128>}, {transform_indices = @transform_7, window_bounds = array<i64: 128, 128>}]} {
    %c0 = arith.constant 0 : index
    %c0_0 = arith.constant 0 : index
    %0 = vector.load %arg1[%c0, %c0_0] : memref<128x768xbf16, #tpu.memory_space<vmem>>, vector<128x768xbf16>
    %c0_1 = arith.constant 0 : index
    %c0_2 = arith.constant 0 : index
    %1 = vector.load %arg2[%c0_1, %c0_2] : memref<768x128xbf16, #tpu.memory_space<vmem>>, vector<768x128xbf16>
    %cst = arith.constant dense<0.000000e+00> : vector<128x128xf32>
    %2 = tpu.matmul %0, %1, %cst {dimension_numbers = #tpu.dot_dimension_numbers<[1], [0], [0], [1], [0, 0, 1, 1], [], []>} : vector<128x768xbf16>, vector<768x128xbf16>, vector<128x128xf32> -> vector<128x128xf32>
    %c0_3 = arith.constant 0 : index
    %c0_4 = arith.constant 0 : index
    %3 = vector.load %arg3[%c0_3, %c0_4] : memref<1x128xf32, #tpu.memory_space<vmem>>, vector<1x128xf32>
    %4 = vector.broadcast %3 : vector<1x128xf32> to vector<128x128xf32>
    %5 = arith.addf %2, %4 : vector<128x128xf32>
    %cst_5 = arith.constant 0.000000e+00 : f32
    %6 = vector.broadcast %cst_5 : f32 to vector<128x128xf32>
    %7 = arith.maximumf %5, %6 : vector<128x128xf32>
    %8 = arith.truncf %7 : vector<128x128xf32> to vector<128x128xbf16>
    %c0_6 = arith.constant 0 : index
    %c0_7 = arith.constant 0 : index
    %9 = vector.load %arg4[%c0_6, %c0_7] : memref<128x128xbf16, #tpu.memory_space<vmem>>, vector<128x128xbf16>
    %cst_8 = arith.constant dense<0.000000e+00> : vector<128x128xf32>
    %10 = tpu.matmul %8, %9, %cst_8 {dimension_numbers = #tpu.dot_dimension_numbers<[1], [0], [0], [1], [0, 0, 1, 1], [], []>} : vector<128x128xbf16>, vector<128x128xbf16>, vector<128x128xf32> -> vector<128x128xf32>
    %c0_9 = arith.constant 0 : index
    %c0_10 = arith.constant 0 : index
    %11 = vector.load %arg5[%c0_9, %c0_10] : memref<1x128xf32, #tpu.memory_space<vmem>>, vector<1x128xf32>
    %12 = vector.broadcast %11 : vector<1x128xf32> to vector<128x128xf32>
    %13 = arith.addf %10, %12 : vector<128x128xf32>
    %cst_11 = arith.constant 0.000000e+00 : f32
    %14 = vector.broadcast %cst_11 : f32 to vector<128x128xf32>
    %15 = arith.maximumf %13, %14 : vector<128x128xf32>
    %16 = arith.truncf %15 : vector<128x128xf32> to vector<128x128xbf16>
    %c0_12 = arith.constant 0 : index
    %c0_13 = arith.constant 0 : index
    %17 = vector.load %arg6[%c0_12, %c0_13] : memref<128x128xbf16, #tpu.memory_space<vmem>>, vector<128x128xbf16>
    %cst_14 = arith.constant dense<0.000000e+00> : vector<128x128xf32>
    %18 = tpu.matmul %16, %17, %cst_14 {dimension_numbers = #tpu.dot_dimension_numbers<[1], [0], [0], [1], [0, 0, 1, 1], [], []>} : vector<128x128xbf16>, vector<128x128xbf16>, vector<128x128xf32> -> vector<128x128xf32>
    %c0_15 = arith.constant 0 : index
    %c0_16 = arith.constant 0 : index
    %19 = vector.load %arg7[%c0_15, %c0_16] : memref<1x128xf32, #tpu.memory_space<vmem>>, vector<1x128xf32>
    %20 = vector.broadcast %19 : vector<1x128xf32> to vector<128x128xf32>
    %21 = arith.addf %18, %20 : vector<128x128xf32>
    %c0_17 = arith.constant 0 : index
    %c0_18 = arith.constant 0 : index
    %22 = vector.load %arg8[%c0_17, %c0_18] : memref<128x128xf32, #tpu.memory_space<vmem>>, vector<128x128xf32>
    tpu.vector_store %arg8[%c0_17, %c0_18], %21 {strides = array<i32>} : memref<128x128xf32, #tpu.memory_space<vmem>>, vector<128x128xf32>,
    return
  }
  func.func @transform_0(%arg0: i32) -> (i32, i32) {
    %c0_i32 = arith.constant 0 : i32
    %c0_i32_0 = arith.constant 0 : i32
    return %arg0, %c0_i32 : i32, i32
  }
  func.func @transform_1(%arg0: i32) -> (i32, i32) {
    %c0_i32 = arith.constant 0 : i32
    %c0_i32_0 = arith.constant 0 : i32
    %c0_i32_1 = arith.constant 0 : i32
    return %c0_i32, %c0_i32_0 : i32, i32
  }
  func.func @transform_2(%arg0: i32) -> (i32, i32) {
    %c0_i32 = arith.constant 0 : i32
    %c0_i32_0 = arith.constant 0 : i32
    %c0_i32_1 = arith.constant 0 : i32
    return %c0_i32, %c0_i32_0 : i32, i32
  }
  func.func @transform_3(%arg0: i32) -> (i32, i32) {
    %c0_i32 = arith.constant 0 : i32
    %c0_i32_0 = arith.constant 0 : i32
    %c0_i32_1 = arith.constant 0 : i32
    return %c0_i32, %c0_i32_0 : i32, i32
  }
  func.func @transform_4(%arg0: i32) -> (i32, i32) {
    %c0_i32 = arith.constant 0 : i32
    %c0_i32_0 = arith.constant 0 : i32
    %c0_i32_1 = arith.constant 0 : i32
    return %c0_i32, %c0_i32_0 : i32, i32
  }
  func.func @transform_5(%arg0: i32) -> (i32, i32) {
    %c0_i32 = arith.constant 0 : i32
    %c0_i32_0 = arith.constant 0 : i32
    %c0_i32_1 = arith.constant 0 : i32
    return %c0_i32, %c0_i32_0 : i32, i32
  }
  func.func @transform_6(%arg0: i32) -> (i32, i32) {
    %c0_i32 = arith.constant 0 : i32
    %c0_i32_0 = arith.constant 0 : i32
    %c0_i32_1 = arith.constant 0 : i32
    return %c0_i32, %c0_i32_0 : i32, i32
  }
  func.func @transform_7(%arg0: i32) -> (i32, i32) {
    %c0_i32 = arith.constant 0 : i32
    %c0_i32_0 = arith.constant 0 : i32
    return %arg0, %c0_i32 : i32, i32
  }
}

</mosaic_0001>

<llo_original>
// kernel: tpu_custom_call.1
$region0: #{tpu_custom_call.1}
  #allocation0 [shape = 'u32[]', space=smem, size = 0x4, offset = 0x4, fixed_abs, tag = 'smem constant byte address 0x4 - core index']
  #allocation1 [shape = 'u32[144,128]{1,0:T(1,128)}', space=vmem, size = 0x12000, scoped, tag = 'internal scratch']
  %s0 = inlined_call_operand.hbm [shape: bf16[128,768], index: 0, kind: input, shape index: {}]
  %s1 = inlined_call_operand.hbm [shape: bf16[768,128], index: 1, kind: input, shape index: {}]
  %s2 = inlined_call_operand.vmem [shape: f32[1,128], index: 2, kind: input, shape index: {}]
  %s3 = inlined_call_operand.hbm [shape: bf16[128,128], index: 3, kind: input, shape index: {}]
  %s4 = inlined_call_operand.vmem [shape: f32[1,128], index: 4, kind: input, shape index: {}]
  %s5 = inlined_call_operand.hbm [shape: bf16[128,128], index: 5, kind: input, shape index: {}]
  %s6 = inlined_call_operand.vmem [shape: f32[1,128], index: 6, kind: input, shape index: {}]
  %s7 = inlined_call_operand.hbm [shape: f32[128,128], index: 7, kind: output, shape index: {}]
  %s8 = sld [smem:[#allocation0]]
  $region54: #{tpu_custom_call.1} parent=0
    _
  %s10 = ssub.s32 1, %s8
  %s11 = scalar_select 0, %s10, %s8
  $region1: #{tpu_custom_call.1} parent=0
    #allocation2 [shape = 'u8[196608]{0}', space=vmem, size = 0x30000, scoped, tag = 'input window, operand 0, single buffered']
    #allocation3 [shape = 's32[1]{0}', space=sflag, size = 0x4, scoped, tag = 'scoped memory for tpu_custom_call.1']
    #allocation4 [shape = 's32[1]{0}', space=sflag, size = 0x4, scoped, tag = 'scoped memory for tpu_custom_call.1']
    #allocation5 [shape = 'u8[196608]{0}', space=vmem, size = 0x30000, scoped, tag = 'input window, operand 1, single buffered']
    #allocation6 [shape = 's32[1]{0}', space=sflag, size = 0x4, scoped, tag = 'scoped memory for tpu_custom_call.1']
    #allocation7 [shape = 'u8[32768]{0}', space=vmem, size = 0x8000, scoped, tag = 'input window, operand 3, single buffered']
    #allocation8 [shape = 'u8[32768]{0}', space=vmem, size = 0x8000, scoped, tag = 'input window, operand 5, single buffered']
    #allocation9 [shape = 's32[1]{0}', space=sflag, size = 0x4, scoped, tag = 'scoped memory for tpu_custom_call.1']
    #allocation10 [shape = 'u8[65536]{0}', space=vmem, size = 0x10000, scoped, tag = 'output window, operand 0, single buffered']
    %12 = vsyncpa [#allocation3], 0
    %13 = vsyncpa [#allocation6], 0
    %14 = vsyncpa [#allocation9], 0
    %15 = vsyncpa [#allocation4], 0
    // Predicated region
    $region2: #{tpu_custom_call.1} parent=1 // pred_check
      _
    $region3: #{tpu_custom_call.1} parent=1 // pred_check_branch
      %17 = sbr.rel (0) target = $region5
    $region4: #{tpu_custom_call.1} parent=1 // pred_region
      %s19 = ssub.s32 6144, 6144
      %20 = vsyncadd [#allocation3], %s19
      %s21 = sshll.u32 [#allocation2], 4
      %s22 = int_to_ptr.vmem [resolvable:$true] %s21
      %27 = dma.hbm_to_vmem [thread:$0]  %s0, 6144, %s22, [#allocation3], 384, 384, 24
    $region5: #{tpu_custom_call.1} parent=1 // pred_fallthru
      _
    // Predicated region
    $region6: #{tpu_custom_call.1} parent=1 // pred_check
      _
    $region7: #{tpu_custom_call.1} parent=1 // pred_check_branch
      %29 = sbr.rel (0) target = $region9
    $region8: #{tpu_custom_call.1} parent=1 // pred_region
      %s31 = ssub.s32 6144, 6144
      %32 = vsyncadd [#allocation6], %s31
      %s33 = sshll.u32 [#allocation5], 4
      %s34 = int_to_ptr.vmem [resolvable:$true] %s33
      %39 = dma.hbm_to_vmem [thread:$0]  %s1, 6144, %s34, [#allocation6], 64, 64, 4
    $region9: #{tpu_custom_call.1} parent=1 // pred_fallthru
      _
    // Predicated region
    $region10: #{tpu_custom_call.1} parent=1 // pred_check
      _
    $region11: #{tpu_custom_call.1} parent=1 // pred_check_branch
      %41 = sbr.rel (0) target = $region13
    $region12: #{tpu_custom_call.1} parent=1 // pred_region
      _
    $region13: #{tpu_custom_call.1} parent=1 // pred_fallthru
      _
    // Predicated region
    $region14: #{tpu_custom_call.1} parent=1 // pred_check
      _
    $region15: #{tpu_custom_call.1} parent=1 // pred_check_branch
      %43 = sbr.rel (0) target = $region17
    $region16: #{tpu_custom_call.1} parent=1 // pred_region
      %s45 = ssub.s32 1024, 1024
      %46 = vsyncadd [#allocation6], %s45
      %s47 = sshll.u32 [#allocation7], 4
      %s48 = int_to_ptr.vmem [resolvable:$true] %s47
      %53 = dma.hbm_to_vmem [thread:$0]  %s3, 1024, %s48, [#allocation6], 64, 64, 4
    $region17: #{tpu_custom_call.1} parent=1 // pred_fallthru
      _
    // Predicated region
    $region18: #{tpu_custom_call.1} parent=1 // pred_check
      _
    $region19: #{tpu_custom_call.1} parent=1 // pred_check_branch
      %55 = sbr.rel (0) target = $region21
    $region20: #{tpu_custom_call.1} parent=1 // pred_region
      _
    $region21: #{tpu_custom_call.1} parent=1 // pred_fallthru
      _
    // Predicated region
    $region22: #{tpu_custom_call.1} parent=1 // pred_check
      _
    $region23: #{tpu_custom_call.1} parent=1 // pred_check_branch
      %57 = sbr.rel (0) target = $region25
    $region24: #{tpu_custom_call.1} parent=1 // pred_region
      %s59 = ssub.s32 1024, 1024
      %60 = vsyncadd [#allocation9], %s59
      %s61 = sshll.u32 [#allocation8], 4
      %s62 = int_to_ptr.vmem [resolvable:$true] %s61
      %67 = dma.hbm_to_vmem [thread:$0]  %s5, 1024, %s62, [#allocation9], 64, 64, 4
    $region25: #{tpu_custom_call.1} parent=1 // pred_fallthru
      _
    // Predicated region
    $region26: #{tpu_custom_call.1} parent=1 // pred_check
      _
    $region27: #{tpu_custom_call.1} parent=1 // pred_check_branch
      %69 = sbr.rel (0) target = $region29
    $region28: #{tpu_custom_call.1} parent=1 // pred_region
      _
    $region29: #{tpu_custom_call.1} parent=1 // pred_fallthru
      _
    // Predicated region
    $region30: #{tpu_custom_call.1} parent=1 // pred_check
      _
    $region31: #{tpu_custom_call.1} parent=1 // pred_check_branch
      %71 = sbr.rel (0) target = $region33
    $region32: #{tpu_custom_call.1} parent=1 // pred_region
      %72 = dma.done [#allocation3], 6144
    $region33: #{tpu_custom_call.1} parent=1 // pred_fallthru
      _
    // Predicated region
    $region34: #{tpu_custom_call.1} parent=1 // pred_check
      _
    $region35: #{tpu_custom_call.1} parent=1 // pred_check_branch
      %74 = sbr.rel (0) target = $region37
    $region36: #{tpu_custom_call.1} parent=1 // pred_region
      %75 = dma.done [#allocation6], 6144
    $region37: #{tpu_custom_call.1} parent=1 // pred_fallthru
      _
    // Predicated region
    $region38: #{tpu_custom_call.1} parent=1 // pred_check
      _
    $region39: #{tpu_custom_call.1} parent=1 // pred_check_branch
      %77 = sbr.rel (0) target = $region41
    $region40: #{tpu_custom_call.1} parent=1 // pred_region
      %78 = dma.done [#allocation6], 1024
    $region41: #{tpu_custom_call.1} parent=1 // pred_fallthru
      _
    // Predicated region
    $region42: #{tpu_custom_call.1} parent=1 // pred_check
      _
    $region43: #{tpu_custom_call.1} parent=1 // pred_check_branch
      %80 = sbr.rel (0) target = $region45
    $region44: #{tpu_custom_call.1} parent=1 // pred_region
      %81 = dma.done [#allocation9], 1024
    $region45: #{tpu_custom_call.1} parent=1 // pred_fallthru
      _
    %v83 = vld [vmem:[#allocation2] sm:$0xff]
    %v84 = vld [vmem:[#allocation2 + $0x8] sm:$0xff]
    %v85 = vld [vmem:[#allocation2 + $0x10] sm:$0xff]
    %v86 = vld [vmem:[#allocation2 + $0x18] sm:$0xff]
    %v87 = vld [vmem:[#allocation2 + $0x20] sm:$0xff]
    %v88 = vld [vmem:[#allocation2 + $0x28] sm:$0xff]
    %v89 = vld [vmem:[#allocation2 + $0x30] sm:$0xff]
    %v90 = vld [vmem:[#allocation2 + $0x38] sm:$0xff]
    %v91 = vld [vmem:[#allocation2 + $0x40] sm:$0xff]
    %v92 = vld [vmem:[#allocation2 + $0x48] sm:$0xff]
    %v93 = vld [vmem:[#allocation2 + $0x50] sm:$0xff]
    %v94 = vld [vmem:[#allocation2 + $0x58] sm:$0xff]
    %v95 = vld [vmem:[#allocation2 + $0x60] sm:$0xff]
    %v96 = vld [vmem:[#allocation2 + $0x68] sm:$0xff]
    %v97 = vld [vmem:[#allocation2 + $0x70] sm:$0xff]
    %v98 = vld [vmem:[#allocation2 + $0x78] sm:$0xff]
    %v99 = vld [vmem:[#allocation2 + $0x80] sm:$0xff]
    %v100 = vld [vmem:[#allocation2 + $0x88] sm:$0xff]
    %v101 = vld [vmem:[#allocation2 + $0x90] sm:$0xff]
    %v102 = vld [vmem:[#allocation2 + $0x98] sm:$0xff]
    %v103 = vld [vmem:[#allocation2 + $0xa0] sm:$0xff]
    %v104 = vld [vmem:[#allocation2 + $0xa8] sm:$0xff]
    %v105 = vld [vmem:[#allocation2 + $0xb0] sm:$0xff]
    %v106 = vld [vmem:[#allocation2 + $0xb8] sm:$0xff]
    %v107 = vld [vmem:[#allocation2 + $0xc0] sm:$0xff]
    %v108 = vld [vmem:[#allocation2 + $0xc8] sm:$0xff]
    %v109 = vld [vmem:[#allocation2 + $0xd0] sm:$0xff]
    %v110 = vld [vmem:[#allocation2 + $0xd8] sm:$0xff]
    %v111 = vld [vmem:[#allocation2 + $0xe0] sm:$0xff]
    %v112 = vld [vmem:[#allocation2 + $0xe8] sm:$0xff]
    %v113 = vld [vmem:[#allocation2 + $0xf0] sm:$0xff]
    %v114 = vld [vmem:[#allocation2 + $0xf8] sm:$0xff]
    %v115 = vld [vmem:[#allocation2 + $0x100] sm:$0xff]
    %v116 = vld [vmem:[#allocation2 + $0x108] sm:$0xff]
    %v117 = vld [vmem:[#allocation2 + $0x110] sm:$0xff]
    %v118 = vld [vmem:[#allocation2 + $0x118] sm:$0xff]
    %v119 = vld [vmem:[#allocation2 + $0x120] sm:$0xff]
    %v120 = vld [vmem:[#allocation2 + $0x128] sm:$0xff]
    %v121 = vld [vmem:[#allocation2 + $0x130] sm:$0xff]
    %v122 = vld [vmem:[#allocation2 + $0x138] sm:$0xff]
    %v123 = vld [vmem:[#allocation2 + $0x140] sm:$0xff]
    %v124 = vld [vmem:[#allocation2 + $0x148] sm:$0xff]
    %v125 = vld [vmem:[#allocation2 + $0x150] sm:$0xff]
    %v126 = vld [vmem:[#allocation2 + $0x158] sm:$0xff]
    %v127 = vld [vmem:[#allocation2 + $0x160] sm:$0xff]
    %v128 = vld [vmem:[#allocation2 + $0x168] sm:$0xff]
    %v129 = vld [vmem:[#allocation2 + $0x170] sm:$0xff]
    %v130 = vld [vmem:[#allocation2 + $0x178] sm:$0xff]
    %v131 = vld [vmem:[#allocation5] sm:$0xf]
    %v132 = vld [vmem:[#allocation5 + $0x4] sm:$0xf]
    %v133 = vld [vmem:[#allocation5 + $0x8] sm:$0xf]
    %v134 = vld [vmem:[#allocation5 + $0xc] sm:$0xf]
    %v135 = vld [vmem:[#allocation5 + $0x10] sm:$0xf]
    %v136 = vld [vmem:[#allocation5 + $0x14] sm:$0xf]
    %v137 = vld [vmem:[#allocation5 + $0x18] sm:$0xf]
    %v138 = vld [vmem:[#allocation5 + $0x1c] sm:$0xf]
    %v139 = vld [vmem:[#allocation5 + $0x20] sm:$0xf]
    %v140 = vld [vmem:[#allocation5 + $0x24] sm:$0xf]
    %v141 = vld [vmem:[#allocation5 + $0x28] sm:$0xf]
    %v142 = vld [vmem:[#allocation5 + $0x2c] sm:$0xf]
    %v143 = vld [vmem:[#allocation5 + $0x30] sm:$0xf]
    %v144 = vld [vmem:[#allocation5 + $0x34] sm:$0xf]
    %v145 = vld [vmem:[#allocation5 + $0x38] sm:$0xf]
    %v146 = vld [vmem:[#allocation5 + $0x3c] sm:$0xf]
    %v147 = vld [vmem:[#allocation5 + $0x40] sm:$0xf]
    %v148 = vld [vmem:[#allocation5 + $0x44] sm:$0xf]
    %v149 = vld [vmem:[#allocation5 + $0x48] sm:$0xf]
    %v150 = vld [vmem:[#allocation5 + $0x4c] sm:$0xf]
    %v151 = vld [vmem:[#allocation5 + $0x50] sm:$0xf]
    %v152 = vld [vmem:[#allocation5 + $0x54] sm:$0xf]
    %v153 = vld [vmem:[#allocation5 + $0x58] sm:$0xf]
    %v154 = vld [vmem:[#allocation5 + $0x5c] sm:$0xf]
    %v155 = vld [vmem:[#allocation5 + $0x60] sm:$0xf]
    %v156 = vld [vmem:[#allocation5 + $0x64] sm:$0xf]
    %v157 = vld [vmem:[#allocation5 + $0x68] sm:$0xf]
    %v158 = vld [vmem:[#allocation5 + $0x6c] sm:$0xf]
    %v159 = vld [vmem:[#allocation5 + $0x70] sm:$0xf]
    %v160 = vld [vmem:[#allocation5 + $0x74] sm:$0xf]
    %v161 = vld [vmem:[#allocation5 + $0x78] sm:$0xf]
    %v162 = vld [vmem:[#allocation5 + $0x7c] sm:$0xf]
    %v163 = vld [vmem:[#allocation5 + $0x80] sm:$0xf]
    %v164 = vld [vmem:[#allocation5 + $0x84] sm:$0xf]
    %v165 = vld [vmem:[#allocation5 + $0x88] sm:$0xf]
    %v166 = vld [vmem:[#allocation5 + $0x8c] sm:$0xf]
    %v167 = vld [vmem:[#allocation5 + $0x90] sm:$0xf]
    %v168 = vld [vmem:[#allocation5 + $0x94] sm:$0xf]
    %v169 = vld [vmem:[#allocation5 + $0x98] sm:$0xf]
    %v170 = vld [vmem:[#allocation5 + $0x9c] sm:$0xf]
    %v171 = vld [vmem:[#allocation5 + $0xa0] sm:$0xf]
    %v172 = vld [vmem:[#allocation5 + $0xa4] sm:$0xf]
    %v173 = vld [vmem:[#allocation5 + $0xa8] sm:$0xf]
    %v174 = vld [vmem:[#allocation5 + $0xac] sm:$0xf]
    %v175 = vld [vmem:[#allocation5 + $0xb0] sm:$0xf]
    %v176 = vld [vmem:[#allocation5 + $0xb4] sm:$0xf]
    %v177 = vld [vmem:[#allocation5 + $0xb8] sm:$0xf]
    %v178 = vld [vmem:[#allocation5 + $0xbc] sm:$0xf]
    %v179 = vld [vmem:[#allocation5 + $0xc0] sm:$0xf]
    %v180 = vld [vmem:[#allocation5 + $0xc4] sm:$0xf]
    %v181 = vld [vmem:[#allocation5 + $0xc8] sm:$0xf]
    %v182 = vld [vmem:[#allocation5 + $0xcc] sm:$0xf]
    %v183 = vld [vmem:[#allocation5 + $0xd0] sm:$0xf]
    %v184 = vld [vmem:[#allocation5 + $0xd4] sm:$0xf]
    %v185 = vld [vmem:[#allocation5 + $0xd8] sm:$0xf]
    %v186 = vld [vmem:[#allocation5 + $0xdc] sm:$0xf]
    %v187 = vld [vmem:[#allocation5 + $0xe0] sm:$0xf]
    %v188 = vld [vmem:[#allocation5 + $0xe4] sm:$0xf]
    %v189 = vld [vmem:[#allocation5 + $0xe8] sm:$0xf]
    %v190 = vld [vmem:[#allocation5 + $0xec] sm:$0xf]
    %v191 = vld [vmem:[#allocation5 + $0xf0] sm:$0xf]
    %v192 = vld [vmem:[#allocation5 + $0xf4] sm:$0xf]
    %v193 = vld [vmem:[#allocation5 + $0xf8] sm:$0xf]
    %v194 = vld [vmem:[#allocation5 + $0xfc] sm:$0xf]
    %v195 = vld [vmem:[#allocation5 + $0x100] sm:$0xf]
    %v196 = vld [vmem:[#allocation5 + $0x104] sm:$0xf]
    %v197 = vld [vmem:[#allocation5 + $0x108] sm:$0xf]
    %v198 = vld [vmem:[#allocation5 + $0x10c] sm:$0xf]
    %v199 = vld [vmem:[#allocation5 + $0x110] sm:$0xf]
    %v200 = vld [vmem:[#allocation5 + $0x114] sm:$0xf]
    %v201 = vld [vmem:[#allocation5 + $0x118] sm:$0xf]
    %v202 = vld [vmem:[#allocation5 + $0x11c] sm:$0xf]
    %v203 = vld [vmem:[#allocation5 + $0x120] sm:$0xf]
    %v204 = vld [vmem:[#allocation5 + $0x124] sm:$0xf]
    %v205 = vld [vmem:[#allocation5 + $0x128] sm:$0xf]
    %v206 = vld [vmem:[#allocation5 + $0x12c] sm:$0xf]
    %v207 = vld [vmem:[#allocation5 + $0x130] sm:$0xf]
    %v208 = vld [vmem:[#allocation5 + $0x134] sm:$0xf]
    %v209 = vld [vmem:[#allocation5 + $0x138] sm:$0xf]
    %v210 = vld [vmem:[#allocation5 + $0x13c] sm:$0xf]
    %v211 = vld [vmem:[#allocation5 + $0x140] sm:$0xf]
    %v212 = vld [vmem:[#allocation5 + $0x144] sm:$0xf]
    %v213 = vld [vmem:[#allocation5 + $0x148] sm:$0xf]
    %v214 = vld [vmem:[#allocation5 + $0x14c] sm:$0xf]
    %v215 = vld [vmem:[#allocation5 + $0x150] sm:$0xf]
    %v216 = vld [vmem:[#allocation5 + $0x154] sm:$0xf]
    %v217 = vld [vmem:[#allocation5 + $0x158] sm:$0xf]
    %v218 = vld [vmem:[#allocation5 + $0x15c] sm:$0xf]
    %v219 = vld [vmem:[#allocation5 + $0x160] sm:$0xf]
    %v220 = vld [vmem:[#allocation5 + $0x164] sm:$0xf]
    %v221 = vld [vmem:[#allocation5 + $0x168] sm:$0xf]
    %v222 = vld [vmem:[#allocation5 + $0x16c] sm:$0xf]
    %v223 = vld [vmem:[#allocation5 + $0x170] sm:$0xf]
    %v224 = vld [vmem:[#allocation5 + $0x174] sm:$0xf]
    %v225 = vld [vmem:[#allocation5 + $0x178] sm:$0xf]
    %v226 = vld [vmem:[#allocation5 + $0x17c] sm:$0xf]
    %v227 = vld [vmem:[%s2] sm:$0x1]
    %v229 = vlaneseq
    %v230 = vshrl.u32 %v229, 7
    %v231 = vsub.s32 0, %v230
    %v232 = vrot.slane %v227, %v231
    %v282 = vunpack.c.l.b16 %v83
    %v283 = vunpack.c.h.b16 %v83
    %v284 = vunpack.c.l.b16 %v84
    %v285 = vunpack.c.h.b16 %v84
    %v286 = vunpack.c.l.b16 %v85
    %v287 = vunpack.c.h.b16 %v85
    %v288 = vunpack.c.l.b16 %v86
    %v289 = vunpack.c.h.b16 %v86
    %v290 = vunpack.c.l.b16 %v87
    %v291 = vunpack.c.h.b16 %v87
    %v292 = vunpack.c.l.b16 %v88
    %v293 = vunpack.c.h.b16 %v88
    %v294 = vunpack.c.l.b16 %v89
    %v295 = vunpack.c.h.b16 %v89
    %v296 = vunpack.c.l.b16 %v90
    %v297 = vunpack.c.h.b16 %v90
    %v298 = vunpack.c.l.b16 %v91
    %v299 = vunpack.c.h.b16 %v91
    %v300 = vunpack.c.l.b16 %v92
    %v301 = vunpack.c.h.b16 %v92
    %v302 = vunpack.c.l.b16 %v93
    %v303 = vunpack.c.h.b16 %v93
    %v304 = vunpack.c.l.b16 %v94
    %v305 = vunpack.c.h.b16 %v94
    %v306 = vunpack.c.l.b16 %v95
    %v307 = vunpack.c.h.b16 %v95
    %v308 = vunpack.c.l.b16 %v96
    %v309 = vunpack.c.h.b16 %v96
    %v310 = vunpack.c.l.b16 %v97
    %v311 = vunpack.c.h.b16 %v97
    %v312 = vunpack.c.l.b16 %v98
    %v313 = vunpack.c.h.b16 %v98
    %v314 = vunpack.c.l.b16 %v99
    %v315 = vunpack.c.h.b16 %v99
    %v316 = vunpack.c.l.b16 %v100
    %v317 = vunpack.c.h.b16 %v100
    %v318 = vunpack.c.l.b16 %v101
    %v319 = vunpack.c.h.b16 %v101
    %v320 = vunpack.c.l.b16 %v102
    %v321 = vunpack.c.h.b16 %v102
    %v322 = vunpack.c.l.b16 %v103
    %v323 = vunpack.c.h.b16 %v103
    %v324 = vunpack.c.l.b16 %v104
    %v325 = vunpack.c.h.b16 %v104
    %v326 = vunpack.c.l.b16 %v105
    %v327 = vunpack.c.h.b16 %v105
    %v328 = vunpack.c.l.b16 %v106
    %v329 = vunpack.c.h.b16 %v106
    %v330 = vunpack.c.l.b16 %v107
    %v331 = vunpack.c.h.b16 %v107
    %v332 = vunpack.c.l.b16 %v108
    %v333 = vunpack.c.h.b16 %v108
    %v334 = vunpack.c.l.b16 %v109
    %v335 = vunpack.c.h.b16 %v109
    %v336 = vunpack.c.l.b16 %v110
    %v337 = vunpack.c.h.b16 %v110
    %v338 = vunpack.c.l.b16 %v111
    %v339 = vunpack.c.h.b16 %v111
    %v340 = vunpack.c.l.b16 %v112
    %v341 = vunpack.c.h.b16 %v112
    %v342 = vunpack.c.l.b16 %v113
    %v343 = vunpack.c.h.b16 %v113
    %v344 = vunpack.c.l.b16 %v114
    %v345 = vunpack.c.h.b16 %v114
    %v346 = vunpack.c.l.b16 %v115
    %v347 = vunpack.c.h.b16 %v115
    %v348 = vunpack.c.l.b16 %v116
    %v349 = vunpack.c.h.b16 %v116
    %v350 = vunpack.c.l.b16 %v117
    %v351 = vunpack.c.h.b16 %v117
    %v352 = vunpack.c.l.b16 %v118
    %v353 = vunpack.c.h.b16 %v118
    %v354 = vunpack.c.l.b16 %v119
    %v355 = vunpack.c.h.b16 %v119
    %v356 = vunpack.c.l.b16 %v120
    %v357 = vunpack.c.h.b16 %v120
    %v358 = vunpack.c.l.b16 %v121
    %v359 = vunpack.c.h.b16 %v121
    %v360 = vunpack.c.l.b16 %v122
    %v361 = vunpack.c.h.b16 %v122
    %v362 = vunpack.c.l.b16 %v123
    %v363 = vunpack.c.h.b16 %v123
    %v364 = vunpack.c.l.b16 %v124
    %v365 = vunpack.c.h.b16 %v124
    %v366 = vunpack.c.l.b16 %v125
    %v367 = vunpack.c.h.b16 %v125
    %v368 = vunpack.c.l.b16 %v126
    %v369 = vunpack.c.h.b16 %v126
    %v370 = vunpack.c.l.b16 %v127
    %v371 = vunpack.c.h.b16 %v127
    %v372 = vunpack.c.l.b16 %v128
    %v373 = vunpack.c.h.b16 %v128
    %v374 = vunpack.c.l.b16 %v129
    %v375 = vunpack.c.h.b16 %v129
    %v376 = vunpack.c.l.b16 %v130
    %v377 = vunpack.c.h.b16 %v130
    %v378 = vpack.c.b16 %v288, %v282
    %v379 = vpack.c.b16 %v289, %v283
    %v380 = vpack.c.b16 %v290, %v284
    %v381 = vpack.c.b16 %v291, %v285
    %v382 = vpack.c.b16 %v292, %v286
    %v383 = vpack.c.b16 %v293, %v287
    %v384 = vpack.c.b16 %v300, %v294
    %v385 = vpack.c.b16 %v301, %v295
    %v386 = vpack.c.b16 %v302, %v296
    %v387 = vpack.c.b16 %v303, %v297
    %v388 = vpack.c.b16 %v304, %v298
    %v389 = vpack.c.b16 %v305, %v299
    %v390 = vpack.c.b16 %v312, %v306
    %v391 = vpack.c.b16 %v313, %v307
    %v392 = vpack.c.b16 %v314, %v308
    %v393 = vpack.c.b16 %v315, %v309
    %v394 = vpack.c.b16 %v316, %v310
    %v395 = vpack.c.b16 %v317, %v311
    %v396 = vpack.c.b16 %v324, %v318
    %v397 = vpack.c.b16 %v325, %v319
    %v398 = vpack.c.b16 %v326, %v320
    %v399 = vpack.c.b16 %v327, %v321
    %v400 = vpack.c.b16 %v328, %v322
    %v401 = vpack.c.b16 %v329, %v323
    %v402 = vpack.c.b16 %v336, %v330
    %v403 = vpack.c.b16 %v337, %v331
    %v404 = vpack.c.b16 %v338, %v332
    %v405 = vpack.c.b16 %v339, %v333
    %v406 = vpack.c.b16 %v340, %v334
    %v407 = vpack.c.b16 %v341, %v335
    %v408 = vpack.c.b16 %v348, %v342
    %v409 = vpack.c.b16 %v349, %v343
    %v410 = vpack.c.b16 %v350, %v344
    %v411 = vpack.c.b16 %v351, %v345
    %v412 = vpack.c.b16 %v352, %v346
    %v413 = vpack.c.b16 %v353, %v347
    %v414 = vpack.c.b16 %v360, %v354
    %v415 = vpack.c.b16 %v361, %v355
    %v416 = vpack.c.b16 %v362, %v356
    %v417 = vpack.c.b16 %v363, %v357
    %v418 = vpack.c.b16 %v364, %v358
    %v419 = vpack.c.b16 %v365, %v359
    %v420 = vpack.c.b16 %v372, %v366
    %v421 = vpack.c.b16 %v373, %v367
    %v422 = vpack.c.b16 %v374, %v368
    %v423 = vpack.c.b16 %v375, %v369
    %v424 = vpack.c.b16 %v376, %v370
    %v425 = vpack.c.b16 %v377, %v371
    %v570 = vunpack.c.l.b16 %v131
    %v571 = vunpack.c.l.b16 %v132
    %v572 = vunpack.c.l.b16 %v133
    %v573 = vunpack.c.l.b16 %v134
    %v574 = vunpack.c.l.b16 %v135
    %v575 = vunpack.c.l.b16 %v136
    %v576 = vunpack.c.l.b16 %v137
    %v577 = vunpack.c.l.b16 %v138
    %v578 = vunpack.c.l.b16 %v139
    %v579 = vunpack.c.l.b16 %v140
    %v580 = vunpack.c.l.b16 %v141
    %v581 = vunpack.c.l.b16 %v142
    %v582 = vunpack.c.l.b16 %v143
    %v583 = vunpack.c.l.b16 %v144
    %v584 = vunpack.c.l.b16 %v145
    %v585 = vunpack.c.l.b16 %v146
    %v586 = vunpack.c.l.b16 %v147
    %v587 = vunpack.c.l.b16 %v148
    %v588 = vunpack.c.l.b16 %v149
    %v589 = vunpack.c.l.b16 %v150
    %v590 = vunpack.c.l.b16 %v151
    %v591 = vunpack.c.l.b16 %v152
    %v592 = vunpack.c.l.b16 %v153
    %v593 = vunpack.c.l.b16 %v154
    %v594 = vunpack.c.l.b16 %v155
    %v595 = vunpack.c.l.b16 %v156
    %v596 = vunpack.c.l.b16 %v157
    %v597 = vunpack.c.l.b16 %v158
    %v598 = vunpack.c.l.b16 %v159
    %v599 = vunpack.c.l.b16 %v160
    %v600 = vunpack.c.l.b16 %v161
    %v601 = vunpack.c.l.b16 %v162
    %v602 = vunpack.c.l.b16 %v163
    %v603 = vunpack.c.l.b16 %v164
    %v604 = vunpack.c.l.b16 %v165
    %v605 = vunpack.c.l.b16 %v166
    %v606 = vunpack.c.l.b16 %v167
    %v607 = vunpack.c.l.b16 %v168
    %v608 = vunpack.c.l.b16 %v169
    %v609 = vunpack.c.l.b16 %v170
    %v610 = vunpack.c.l.b16 %v171
    %v611 = vunpack.c.l.b16 %v172
    %v612 = vunpack.c.l.b16 %v173
    %v613 = vunpack.c.l.b16 %v174
    %v614 = vunpack.c.l.b16 %v175
    %v615 = vunpack.c.l.b16 %v176
    %v616 = vunpack.c.l.b16 %v177
    %v617 = vunpack.c.l.b16 %v178
    %v618 = vunpack.c.l.b16 %v179
    %v619 = vunpack.c.l.b16 %v180
    %v620 = vunpack.c.l.b16 %v181
    %v621 = vunpack.c.l.b16 %v182
    %v622 = vunpack.c.l.b16 %v183
    %v623 = vunpack.c.l.b16 %v184
    %v624 = vunpack.c.l.b16 %v185
    %v625 = vunpack.c.l.b16 %v186
    %v626 = vunpack.c.l.b16 %v187
    %v627 = vunpack.c.l.b16 %v188
    %v628 = vunpack.c.l.b16 %v189
    %v629 = vunpack.c.l.b16 %v190
    %v630 = vunpack.c.l.b16 %v191
    %v631 = vunpack.c.l.b16 %v192
    %v632 = vunpack.c.l.b16 %v193
    %v633 = vunpack.c.l.b16 %v194
    %v634 = vunpack.c.l.b16 %v195
    %v635 = vunpack.c.l.b16 %v196
    %v636 = vunpack.c.l.b16 %v197
    %v637 = vunpack.c.l.b16 %v198
    %v638 = vunpack.c.l.b16 %v199
    %v639 = vunpack.c.l.b16 %v200
    %v640 = vunpack.c.l.b16 %v201
    %v641 = vunpack.c.l.b16 %v202
    %v642 = vunpack.c.l.b16 %v203
    %v643 = vunpack.c.l.b16 %v204
    %v644 = vunpack.c.l.b16 %v205
    %v645 = vunpack.c.l.b16 %v206
    %v646 = vunpack.c.l.b16 %v207
    %v647 = vunpack.c.l.b16 %v208
    %v648 = vunpack.c.l.b16 %v209
    %v649 = vunpack.c.l.b16 %v210
    %v650 = vunpack.c.l.b16 %v211
    %v651 = vunpack.c.l.b16 %v212
    %v652 = vunpack.c.l.b16 %v213
    %v653 = vunpack.c.l.b16 %v214
    %v654 = vunpack.c.l.b16 %v215
    %v655 = vunpack.c.l.b16 %v216
    %v656 = vunpack.c.l.b16 %v217
    %v657 = vunpack.c.l.b16 %v218
    %v658 = vunpack.c.l.b16 %v219
    %v659 = vunpack.c.l.b16 %v220
    %v660 = vunpack.c.l.b16 %v221
    %v661 = vunpack.c.l.b16 %v222
    %v662 = vunpack.c.l.b16 %v223
    %v663 = vunpack.c.l.b16 %v224
    %v664 = vunpack.c.l.b16 %v225
    %v665 = vunpack.c.l.b16 %v226
    %v666 = vpack.c.b16 %v571, %v570
    %v667 = vpack.c.b16 %v573, %v572
    %v668 = vpack.c.b16 %v575, %v574
    %v669 = vpack.c.b16 %v577, %v576
    %v670 = vpack.c.b16 %v579, %v578
    %v671 = vpack.c.b16 %v581, %v580
    %v672 = vpack.c.b16 %v583, %v582
    %v673 = vpack.c.b16 %v585, %v584
    %v674 = vpack.c.b16 %v587, %v586
    %v675 = vpack.c.b16 %v589, %v588
    %v676 = vpack.c.b16 %v591, %v590
    %v677 = vpack.c.b16 %v593, %v592
    %v678 = vpack.c.b16 %v595, %v594
    %v679 = vpack.c.b16 %v597, %v596
    %v680 = vpack.c.b16 %v599, %v598
    %v681 = vpack.c.b16 %v601, %v600
    %v682 = vpack.c.b16 %v603, %v602
    %v683 = vpack.c.b16 %v605, %v604
    %v684 = vpack.c.b16 %v607, %v606
    %v685 = vpack.c.b16 %v609, %v608
    %v686 = vpack.c.b16 %v611, %v610
    %v687 = vpack.c.b16 %v613, %v612
    %v688 = vpack.c.b16 %v615, %v614
    %v689 = vpack.c.b16 %v617, %v616
    %v690 = vpack.c.b16 %v619, %v618
    %v691 = vpack.c.b16 %v621, %v620
    %v692 = vpack.c.b16 %v623, %v622
    %v693 = vpack.c.b16 %v625, %v624
    %v694 = vpack.c.b16 %v627, %v626
    %v695 = vpack.c.b16 %v629, %v628
    %v696 = vpack.c.b16 %v631, %v630
    %v697 = vpack.c.b16 %v633, %v632
    %v698 = vpack.c.b16 %v635, %v634
    %v699 = vpack.c.b16 %v637, %v636
    %v700 = vpack.c.b16 %v639, %v638
    %v701 = vpack.c.b16 %v641, %v640
    %v702 = vpack.c.b16 %v643, %v642
    %v703 = vpack.c.b16 %v645, %v644
    %v704 = vpack.c.b16 %v647, %v646
    %v705 = vpack.c.b16 %v649, %v648
    %v706 = vpack.c.b16 %v651, %v650
    %v707 = vpack.c.b16 %v653, %v652
    %v708 = vpack.c.b16 %v655, %v654
    %v709 = vpack.c.b16 %v657, %v656
    %v710 = vpack.c.b16 %v659, %v658
    %v711 = vpack.c.b16 %v661, %v660
    %v712 = vpack.c.b16 %v663, %v662
    %v713 = vpack.c.b16 %v665, %v664
    %762 = vmatprep.subr.bf16.mxu0 0
    %763 = vmatpush1.bf16.msra.mxu0 %v666
    %764 = vmatprep.subr.bf16.mxu0 0
    %765 = vmatpush1.bf16.msra.mxu0 %v667
    %766 = vmatprep.subr.bf16.mxu0 0
    %767 = vmatpush1.bf16.msra.mxu0 %v668
    %768 = vmatprep.subr.bf16.mxu0 0
    %769 = vmatpush1.bf16.msra.mxu0 %v669
    %770 = vmatprep.subr.bf16.mxu0 0
    %771 = vmatpush1.bf16.msra.mxu0 %v670
    %772 = vmatprep.subr.bf16.mxu0 0
    %773 = vmatpush1.bf16.msra.mxu0 %v671
    %774 = vmatprep.subr.bf16.mxu0 0
    %775 = vmatpush1.bf16.msra.mxu0 %v672
    %776 = vmatprep.subr.bf16.mxu0 0
    %777 = vmatpush1.bf16.msra.mxu0 %v673
    %778 = vmatprep.subr.bf16.mxu0 0
    %779 = vmatpush1.bf16.msra.mxu0 %v674
    %780 = vmatprep.subr.bf16.mxu0 0
    %781 = vmatpush1.bf16.msra.mxu0 %v675
    %782 = vmatprep.subr.bf16.mxu0 0
    %783 = vmatpush1.bf16.msra.mxu0 %v676
    %784 = vmatprep.subr.bf16.mxu0 0
    %785 = vmatpush1.bf16.msra.mxu0 %v677
    %786 = vmatprep.subr.bf16.mxu0 0
    %787 = vmatpush1.bf16.msra.mxu0 %v678
    %788 = vmatprep.subr.bf16.mxu0 0
    %789 = vmatpush1.bf16.msra.mxu0 %v679
    %790 = vmatprep.subr.bf16.mxu0 0
    %791 = vmatpush1.bf16.msra.mxu0 %v680
    %792 = vmatprep.subr.bf16.mxu0 0
    %793 = vmatpush1.bf16.msra.mxu0 %v681
    %794 = vmatprep.mubr.bf16.mxu0 %v379
    %795 = vmatmul.mubr.bf16.gmra.mrb[0].mxu0 %v378
    %v796 = vpop.f32.mrb[0].mxu0
    %v797 = vadd.f32 %v232, %v796
    %v798 = vpop.f32.mrb[0].mxu0
    %v799 = vpop.f32.mrb[0].mxu0
    %v800 = vadd.f32 %v232, %v799
    %v801 = vpop.f32.mrb[0].mxu0
    %802 = vmatprep.mubr.bf16.mxu0 %v385
    %803 = vmatmul.mubr.bf16.gmra.mrb[0].mxu0 %v384
    %v804 = vpop.f32.mrb[0].mxu0
    %v805 = vadd.f32 %v232, %v804
    %v806 = vpop.f32.mrb[0].mxu0
    %v807 = vpop.f32.mrb[0].mxu0
    %v808 = vadd.f32 %v232, %v807
    %v809 = vpop.f32.mrb[0].mxu0
    %810 = vmatprep.mubr.bf16.mxu0 %v391
    %811 = vmatmul.mubr.bf16.gmra.mrb[0].mxu0 %v390
    %v812 = vpop.f32.mrb[0].mxu0
    %v813 = vadd.f32 %v232, %v812
    %v814 = vpop.f32.mrb[0].mxu0
    %v815 = vpop.f32.mrb[0].mxu0
    %v816 = vadd.f32 %v232, %v815
    %v817 = vpop.f32.mrb[0].mxu0
    %818 = vmatprep.mubr.bf16.mxu0 %v397
    %819 = vmatmul.mubr.bf16.gmra.mrb[0].mxu0 %v396
    %v820 = vpop.f32.mrb[0].mxu0
    %v821 = vadd.f32 %v232, %v820
    %v822 = vpop.f32.mrb[0].mxu0
    %v823 = vpop.f32.mrb[0].mxu0
    %v824 = vadd.f32 %v232, %v823
    %v825 = vpop.f32.mrb[0].mxu0
    %826 = vmatprep.mubr.bf16.mxu0 %v403
    %827 = vmatmul.mubr.bf16.gmra.mrb[0].mxu0 %v402
    %v828 = vpop.f32.mrb[0].mxu0
    %v829 = vadd.f32 %v232, %v828
    %v830 = vpop.f32.mrb[0].mxu0
    %v831 = vpop.f32.mrb[0].mxu0
    %v832 = vadd.f32 %v232, %v831
    %v833 = vpop.f32.mrb[0].mxu0
    %834 = vmatprep.mubr.bf16.mxu0 %v409
    %835 = vmatmul.mubr.bf16.gmra.mrb[0].mxu0 %v408
    %v836 = vpop.f32.mrb[0].mxu0
    %v837 = vadd.f32 %v232, %v836
    %v838 = vpop.f32.mrb[0].mxu0
    %v839 = vpop.f32.mrb[0].mxu0
    %v840 = vadd.f32 %v232, %v839
    %v841 = vpop.f32.mrb[0].mxu0
    %842 = vmatprep.mubr.bf16.mxu0 %v415
    %843 = vmatmul.mubr.bf16.gmra.mrb[0].mxu0 %v414
    %v844 = vpop.f32.mrb[0].mxu0
    %v845 = vadd.f32 %v232, %v844
    %v846 = vpop.f32.mrb[0].mxu0
    %v847 = vpop.f32.mrb[0].mxu0
    %v848 = vadd.f32 %v232, %v847
    %v849 = vpop.f32.mrb[0].mxu0
    %850 = vmatprep.mubr.bf16.mxu0 %v421
    %851 = vmatmul.mubr.bf16.gmra.mrb[0].mxu0 %v420
    %v852 = vpop.f32.mrb[0].mxu0
    %v853 = vadd.f32 %v232, %v852
    %v854 = vpop.f32.mrb[0].mxu0
    %v855 = vpop.f32.mrb[0].mxu0
    %v856 = vadd.f32 %v232, %v855
    %v857 = vpop.f32.mrb[0].mxu0
    %858 = vdwg.mxu0
    %859 = vmatprep.subr.bf16.mxu0 0
    %860 = vmatpush1.bf16.msra.mxu0 %v682
    %861 = vmatprep.subr.bf16.mxu0 0
    %862 = vmatpush1.bf16.msra.mxu0 %v683
    %863 = vmatprep.subr.bf16.mxu0 0
    %864 = vmatpush1.bf16.msra.mxu0 %v684
    %865 = vmatprep.subr.bf16.mxu0 0
    %866 = vmatpush1.bf16.msra.mxu0 %v685
    %867 = vmatprep.subr.bf16.mxu0 0
    %868 = vmatpush1.bf16.msra.mxu0 %v686
    %869 = vmatprep.subr.bf16.mxu0 0
    %870 = vmatpush1.bf16.msra.mxu0 %v687
    %871 = vmatprep.subr.bf16.mxu0 0
    %872 = vmatpush1.bf16.msra.mxu0 %v688
    %873 = vmatprep.subr.bf16.mxu0 0
    %874 = vmatpush1.bf16.msra.mxu0 %v689
    %875 = vmatprep.subr.bf16.mxu0 0
    %876 = vmatpush1.bf16.msra.mxu0 %v690
    %877 = vmatprep.subr.bf16.mxu0 0
    %878 = vmatpush1.bf16.msra.mxu0 %v691
    %879 = vmatprep.subr.bf16.mxu0 0
    %880 = vmatpush1.bf16.msra.mxu0 %v692
    %881 = vmatprep.subr.bf16.mxu0 0
    %882 = vmatpush1.bf16.msra.mxu0 %v693
    %883 = vmatprep.subr.bf16.mxu0 0
    %884 = vmatpush1.bf16.msra.mxu0 %v694
    %885 = vmatprep.subr.bf16.mxu0 0
    %886 = vmatpush1.bf16.msra.mxu0 %v695
    %887 = vmatprep.subr.bf16.mxu0 0
    %888 = vmatpush1.bf16.msra.mxu0 %v696
    %889 = vmatprep.subr.bf16.mxu0 0
    %890 = vmatpush1.bf16.msra.mxu0 %v697
    %891 = vmatprep.mubr.bf16.mxu0 %v381
    %892 = vmatmul.mubr.bf16.gmra.mrb[0].mxu0 %v380
    %v893 = vpop.f32.mrb[0].mxu0
    %v894 = vadd.f32 %v797, %v893
    %v895 = vpop.f32.mrb[0].mxu0
    %v896 = vpop.f32.mrb[0].mxu0
    %v897 = vadd.f32 %v800, %v896
    %v898 = vpop.f32.mrb[0].mxu0
    %899 = vmatprep.mubr.bf16.mxu0 %v387
    %900 = vmatmul.mubr.bf16.gmra.mrb[0].mxu0 %v386
    %v901 = vpop.f32.mrb[0].mxu0
    %v902 = vadd.f32 %v805, %v901
    %v903 = vpop.f32.mrb[0].mxu0
    %v904 = vpop.f32.mrb[0].mxu0
    %v905 = vadd.f32 %v808, %v904
    %v906 = vpop.f32.mrb[0].mxu0
    %907 = vmatprep.mubr.bf16.mxu0 %v393
    %908 = vmatmul.mubr.bf16.gmra.mrb[0].mxu0 %v392
    %v909 = vpop.f32.mrb[0].mxu0
    %v910 = vadd.f32 %v813, %v909
    %v911 = vpop.f32.mrb[0].mxu0
    %v912 = vpop.f32.mrb[0].mxu0
    %v913 = vadd.f32 %v816, %v912
    %v914 = vpop.f32.mrb[0].mxu0
    %915 = vmatprep.mubr.bf16.mxu0 %v399
    %916 = vmatmul.mubr.bf16.gmra.mrb[0].mxu0 %v398
    %v917 = vpop.f32.mrb[0].mxu0
    %v918 = vadd.f32 %v821, %v917
    %v919 = vpop.f32.mrb[0].mxu0
    %v920 = vpop.f32.mrb[0].mxu0
    %v921 = vadd.f32 %v824, %v920
    %v922 = vpop.f32.mrb[0].mxu0
    %923 = vmatprep.mubr.bf16.mxu0 %v405
    %924 = vmatmul.mubr.bf16.gmra.mrb[0].mxu0 %v404
    %v925 = vpop.f32.mrb[0].mxu0
    %v926 = vadd.f32 %v829, %v925
    %v927 = vpop.f32.mrb[0].mxu0
    %v928 = vpop.f32.mrb[0].mxu0
    %v929 = vadd.f32 %v832, %v928
    %v930 = vpop.f32.mrb[0].mxu0
    %931 = vmatprep.mubr.bf16.mxu0 %v411
    %932 = vmatmul.mubr.bf16.gmra.mrb[0].mxu0 %v410
    %v933 = vpop.f32.mrb[0].mxu0
    %v934 = vadd.f32 %v837, %v933
    %v935 = vpop.f32.mrb[0].mxu0
    %v936 = vpop.f32.mrb[0].mxu0
    %v937 = vadd.f32 %v840, %v936
    %v938 = vpop.f32.mrb[0].mxu0
    %939 = vmatprep.mubr.bf16.mxu0 %v417
    %940 = vmatmul.mubr.bf16.gmra.mrb[0].mxu0 %v416
    %v941 = vpop.f32.mrb[0].mxu0
    %v942 = vadd.f32 %v845, %v941
    %v943 = vpop.f32.mrb[0].mxu0
    %v944 = vpop.f32.mrb[0].mxu0
    %v945 = vadd.f32 %v848, %v944
    %v946 = vpop.f32.mrb[0].mxu0
    %947 = vmatprep.mubr.bf16.mxu0 %v423
    %948 = vmatmul.mubr.bf16.gmra.mrb[0].mxu0 %v422
    %v949 = vpop.f32.mrb[0].mxu0
    %v950 = vadd.f32 %v853, %v949
    %v951 = vpop.f32.mrb[0].mxu0
    %v952 = vpop.f32.mrb[0].mxu0
    %v953 = vadd.f32 %v856, %v952
    %v954 = vpop.f32.mrb[0].mxu0
    %955 = vdwg.mxu0
    %956 = vmatprep.subr.bf16.mxu0 0
    %957 = vmatpush1.bf16.msra.mxu0 %v698
    %958 = vmatprep.subr.bf16.mxu0 0
    %959 = vmatpush1.bf16.msra.mxu0 %v699
    %960 = vmatprep.subr.bf16.mxu0 0
    %961 = vmatpush1.bf16.msra.mxu0 %v700
    %962 = vmatprep.subr.bf16.mxu0 0
    %963 = vmatpush1.bf16.msra.mxu0 %v701
    %964 = vmatprep.subr.bf16.mxu0 0
    %965 = vmatpush1.bf16.msra.mxu0 %v702
    %966 = vmatprep.subr.bf16.mxu0 0
    %967 = vmatpush1.bf16.msra.mxu0 %v703
    %968 = vmatprep.subr.bf16.mxu0 0
    %969 = vmatpush1.bf16.msra.mxu0 %v704
    %970 = vmatprep.subr.bf16.mxu0 0
    %971 = vmatpush1.bf16.msra.mxu0 %v705
    %972 = vmatprep.subr.bf16.mxu0 0
    %973 = vmatpush1.bf16.msra.mxu0 %v706
    %974 = vmatprep.subr.bf16.mxu0 0
    %975 = vmatpush1.bf16.msra.mxu0 %v707
    %976 = vmatprep.subr.bf16.mxu0 0
    %977 = vmatpush1.bf16.msra.mxu0 %v708
    %978 = vmatprep.subr.bf16.mxu0 0
    %979 = vmatpush1.bf16.msra.mxu0 %v709
    %980 = vmatprep.subr.bf16.mxu0 0
    %981 = vmatpush1.bf16.msra.mxu0 %v710
    %982 = vmatprep.subr.bf16.mxu0 0
    %983 = vmatpush1.bf16.msra.mxu0 %v711
    %984 = vmatprep.subr.bf16.mxu0 0
    %985 = vmatpush1.bf16.msra.mxu0 %v712
    %986 = vmatprep.subr.bf16.mxu0 0
    %987 = vmatpush1.bf16.msra.mxu0 %v713
    %988 = vmatprep.mubr.bf16.mxu0 %v383
    %989 = vmatmul.mubr.bf16.gmra.mrb[0].mxu0 %v382
    %v990 = vpop.f32.mrb[0].mxu0
    %v991 = vadd.f32 %v894, %v990
    %v992 = vpop.f32.mrb[0].mxu0
    %v993 = vpop.f32.mrb[0].mxu0
    %v994 = vadd.f32 %v897, %v993
    %v995 = vpop.f32.mrb[0].mxu0
    %996 = vmatprep.mubr.bf16.mxu0 %v389
    %997 = vmatmul.mubr.bf16.gmra.mrb[0].mxu0 %v388
    %v998 = vpop.f32.mrb[0].mxu0
    %v999 = vadd.f32 %v902, %v998
    %v1000 = vpop.f32.mrb[0].mxu0
    %v1001 = vpop.f32.mrb[0].mxu0
    %v1002 = vadd.f32 %v905, %v1001
    %v1003 = vpop.f32.mrb[0].mxu0
    %1004 = vmatprep.mubr.bf16.mxu0 %v395
    %1005 = vmatmul.mubr.bf16.gmra.mrb[0].mxu0 %v394
    %v1006 = vpop.f32.mrb[0].mxu0
    %v1007 = vadd.f32 %v910, %v1006
    %v1008 = vpop.f32.mrb[0].mxu0
    %v1009 = vpop.f32.mrb[0].mxu0
    %v1010 = vadd.f32 %v913, %v1009
    %v1011 = vpop.f32.mrb[0].mxu0
    %1012 = vmatprep.mubr.bf16.mxu0 %v401
    %1013 = vmatmul.mubr.bf16.gmra.mrb[0].mxu0 %v400
    %v1014 = vpop.f32.mrb[0].mxu0
    %v1015 = vadd.f32 %v918, %v1014
    %v1016 = vpop.f32.mrb[0].mxu0
    %v1017 = vpop.f32.mrb[0].mxu0
    %v1018 = vadd.f32 %v921, %v1017
    %v1019 = vpop.f32.mrb[0].mxu0
    %1020 = vmatprep.mubr.bf16.mxu0 %v407
    %1021 = vmatmul.mubr.bf16.gmra.mrb[0].mxu0 %v406
    %v1022 = vpop.f32.mrb[0].mxu0
    %v1023 = vadd.f32 %v926, %v1022
    %v1024 = vpop.f32.mrb[0].mxu0
    %v1025 = vpop.f32.mrb[0].mxu0
    %v1026 = vadd.f32 %v929, %v1025
    %v1027 = vpop.f32.mrb[0].mxu0
    %1028 = vmatprep.mubr.bf16.mxu0 %v413
    %1029 = vmatmul.mubr.bf16.gmra.mrb[0].mxu0 %v412
    %v1030 = vpop.f32.mrb[0].mxu0
    %v1031 = vadd.f32 %v934, %v1030
    %v1032 = vpop.f32.mrb[0].mxu0
    %v1033 = vpop.f32.mrb[0].mxu0
    %v1034 = vadd.f32 %v937, %v1033
    %v1035 = vpop.f32.mrb[0].mxu0
    %1036 = vmatprep.mubr.bf16.mxu0 %v419
    %1037 = vmatmul.mubr.bf16.gmra.mrb[0].mxu0 %v418
    %v1038 = vpop.f32.mrb[0].mxu0
    %v1039 = vadd.f32 %v942, %v1038
    %v1040 = vpop.f32.mrb[0].mxu0
    %v1041 = vpop.f32.mrb[0].mxu0
    %v1042 = vadd.f32 %v945, %v1041
    %v1043 = vpop.f32.mrb[0].mxu0
    %1044 = vmatprep.mubr.bf16.mxu0 %v425
    %1045 = vmatmul.mubr.bf16.gmra.mrb[0].mxu0 %v424
    %v1046 = vpop.f32.mrb[0].mxu0
    %v1047 = vadd.f32 %v950, %v1046
    %v1048 = vpop.f32.mrb[0].mxu0
    %v1049 = vpop.f32.mrb[0].mxu0
    %v1050 = vadd.f32 %v953, %v1049
    %v1051 = vpop.f32.mrb[0].mxu0
    %1052 = vdwg.mxu0
    %v1053 = vmax.f32 %v991, 0.0
    %v1054 = vmax.f32 %v994, 0.0
    %v1055 = vmax.f32 %v999, 0.0
    %v1056 = vmax.f32 %v1002, 0.0
    %v1057 = vmax.f32 %v1007, 0.0
    %v1058 = vmax.f32 %v1010, 0.0
    %v1059 = vmax.f32 %v1015, 0.0
    %v1060 = vmax.f32 %v1018, 0.0
    %v1061 = vmax.f32 %v1023, 0.0
    %v1062 = vmax.f32 %v1026, 0.0
    %v1063 = vmax.f32 %v1031, 0.0
    %v1064 = vmax.f32 %v1034, 0.0
    %v1065 = vmax.f32 %v1039, 0.0
    %v1066 = vmax.f32 %v1042, 0.0
    %v1067 = vmax.f32 %v1047, 0.0
    %v1068 = vmax.f32 %v1050, 0.0
    %v1069 = vpack.c.bf16 %v1054, %v1053
    %v1070 = vpack.c.bf16 %v1056, %v1055
    %v1071 = vpack.c.bf16 %v1058, %v1057
    %v1072 = vpack.c.bf16 %v1060, %v1059
    %v1073 = vpack.c.bf16 %v1062, %v1061
    %v1074 = vpack.c.bf16 %v1064, %v1063
    %v1075 = vpack.c.bf16 %v1066, %v1065
    %v1076 = vpack.c.bf16 %v1068, %v1067
    %v1077 = vld [vmem:[#allocation7] sm:$0xf]
    %v1078 = vld [vmem:[#allocation7 + $0x4] sm:$0xf]
    %v1079 = vld [vmem:[#allocation7 + $0x8] sm:$0xf]
    %v1080 = vld [vmem:[#allocation7 + $0xc] sm:$0xf]
    %v1081 = vld [vmem:[#allocation7 + $0x10] sm:$0xf]
    %v1082 = vld [vmem:[#allocation7 + $0x14] sm:$0xf]
    %v1083 = vld [vmem:[#allocation7 + $0x18] sm:$0xf]
    %v1084 = vld [vmem:[#allocation7 + $0x1c] sm:$0xf]
    %v1085 = vld [vmem:[#allocation7 + $0x20] sm:$0xf]
    %v1086 = vld [vmem:[#allocation7 + $0x24] sm:$0xf]
    %v1087 = vld [vmem:[#allocation7 + $0x28] sm:$0xf]
    %v1088 = vld [vmem:[#allocation7 + $0x2c] sm:$0xf]
    %v1089 = vld [vmem:[#allocation7 + $0x30] sm:$0xf]
    %v1090 = vld [vmem:[#allocation7 + $0x34] sm:$0xf]
    %v1091 = vld [vmem:[#allocation7 + $0x38] sm:$0xf]
    %v1092 = vld [vmem:[#allocation7 + $0x3c] sm:$0xf]
    %v1093 = vld [vmem:[%s4] sm:$0x1]
    %v1095 = vlaneseq
    %v1096 = vshrl.u32 %v1095, 7
    %v1097 = vsub.s32 0, %v1096
    %v1098 = vrot.slane %v1093, %v1097
    %v1116 = vunpack.c.l.b16 %v1077
    %v1117 = vunpack.c.l.b16 %v1078
    %v1118 = vunpack.c.l.b16 %v1079
    %v1119 = vunpack.c.l.b16 %v1080
    %v1120 = vunpack.c.l.b16 %v1081
    %v1121 = vunpack.c.l.b16 %v1082
    %v1122 = vunpack.c.l.b16 %v1083
    %v1123 = vunpack.c.l.b16 %v1084
    %v1124 = vunpack.c.l.b16 %v1085
    %v1125 = vunpack.c.l.b16 %v1086
    %v1126 = vunpack.c.l.b16 %v1087
    %v1127 = vunpack.c.l.b16 %v1088
    %v1128 = vunpack.c.l.b16 %v1089
    %v1129 = vunpack.c.l.b16 %v1090
    %v1130 = vunpack.c.l.b16 %v1091
    %v1131 = vunpack.c.l.b16 %v1092
    %v1132 = vpack.c.b16 %v1117, %v1116
    %v1133 = vpack.c.b16 %v1119, %v1118
    %v1134 = vpack.c.b16 %v1121, %v1120
    %v1135 = vpack.c.b16 %v1123, %v1122
    %v1136 = vpack.c.b16 %v1125, %v1124
    %v1137 = vpack.c.b16 %v1127, %v1126
    %v1138 = vpack.c.b16 %v1129, %v1128
    %v1139 = vpack.c.b16 %v1131, %v1130
    %1148 = vmatprep.subr.bf16.mxu0 0
    %1149 = vmatpush1.bf16.msra.mxu0 %v1132
    %1150 = vmatprep.subr.bf16.mxu0 0
    %1151 = vmatpush1.bf16.msra.mxu0 %v1133
    %1152 = vmatprep.subr.bf16.mxu0 0
    %1153 = vmatpush1.bf16.msra.mxu0 %v1134
    %1154 = vmatprep.subr.bf16.mxu0 0
    %1155 = vmatpush1.bf16.msra.mxu0 %v1135
    %1156 = vmatprep.subr.bf16.mxu0 0
    %1157 = vmatpush1.bf16.msra.mxu0 %v1136
    %1158 = vmatprep.subr.bf16.mxu0 0
    %1159 = vmatpush1.bf16.msra.mxu0 %v1137
    %1160 = vmatprep.subr.bf16.mxu0 0
    %1161 = vmatpush1.bf16.msra.mxu0 %v1138
    %1162 = vmatprep.subr.bf16.mxu0 0
    %1163 = vmatpush1.bf16.msra.mxu0 %v1139
    %1164 = vmatprep.subr.bf16.mxu0 0
    %1165 = vmatpush1.bf16.msra.mxu0 0
    %1166 = vmatprep.subr.bf16.mxu0 0
    %1167 = vmatpush1.bf16.msra.mxu0 0
    %1168 = vmatprep.subr.bf16.mxu0 0
    %1169 = vmatpush1.bf16.msra.mxu0 0
    %1170 = vmatprep.subr.bf16.mxu0 0
    %1171 = vmatpush1.bf16.msra.mxu0 0
    %1172 = vmatprep.subr.bf16.mxu0 0
    %1173 = vmatpush1.bf16.msra.mxu0 0
    %1174 = vmatprep.subr.bf16.mxu0 0
    %1175 = vmatpush1.bf16.msra.mxu0 0
    %1176 = vmatprep.subr.bf16.mxu0 0
    %1177 = vmatpush1.bf16.msra.mxu0 0
    %1178 = vmatprep.subr.bf16.mxu0 0
    %1179 = vmatpush1.bf16.msra.mxu0 0
    %1180 = vmatprep.mubr.bf16.mxu0 0
    %1181 = vmatmul.mubr.bf16.gmra.mrb[0].mxu0 %v1069
    %v1182 = vpop.f32.mrb[0].mxu0
    %v1183 = vadd.f32 %v1098, %v1182
    %v1184 = vpop.f32.mrb[0].mxu0
    %v1185 = vpop.f32.mrb[0].mxu0
    %v1186 = vadd.f32 %v1098, %v1185
    %v1187 = vpop.f32.mrb[0].mxu0
    %1188 = vmatprep.mubr.bf16.mxu0 0
    %1189 = vmatmul.mubr.bf16.gmra.mrb[0].mxu0 %v1070
    %v1190 = vpop.f32.mrb[0].mxu0
    %v1191 = vadd.f32 %v1098, %v1190
    %v1192 = vpop.f32.mrb[0].mxu0
    %v1193 = vpop.f32.mrb[0].mxu0
    %v1194 = vadd.f32 %v1098, %v1193
    %v1195 = vpop.f32.mrb[0].mxu0
    %1196 = vmatprep.mubr.bf16.mxu0 0
    %1197 = vmatmul.mubr.bf16.gmra.mrb[0].mxu0 %v1071
    %v1198 = vpop.f32.mrb[0].mxu0
    %v1199 = vadd.f32 %v1098, %v1198
    %v1200 = vpop.f32.mrb[0].mxu0
    %v1201 = vpop.f32.mrb[0].mxu0
    %v1202 = vadd.f32 %v1098, %v1201
    %v1203 = vpop.f32.mrb[0].mxu0
    %1204 = vmatprep.mubr.bf16.mxu0 0
    %1205 = vmatmul.mubr.bf16.gmra.mrb[0].mxu0 %v1072
    %v1206 = vpop.f32.mrb[0].mxu0
    %v1207 = vadd.f32 %v1098, %v1206
    %v1208 = vpop.f32.mrb[0].mxu0
    %v1209 = vpop.f32.mrb[0].mxu0
    %v1210 = vadd.f32 %v1098, %v1209
    %v1211 = vpop.f32.mrb[0].mxu0
    %1212 = vmatprep.mubr.bf16.mxu0 0
    %1213 = vmatmul.mubr.bf16.gmra.mrb[0].mxu0 %v1073
    %v1214 = vpop.f32.mrb[0].mxu0
    %v1215 = vadd.f32 %v1098, %v1214
    %v1216 = vpop.f32.mrb[0].mxu0
    %v1217 = vpop.f32.mrb[0].mxu0
    %v1218 = vadd.f32 %v1098, %v1217
    %v1219 = vpop.f32.mrb[0].mxu0
    %1220 = vmatprep.mubr.bf16.mxu0 0
    %1221 = vmatmul.mubr.bf16.gmra.mrb[0].mxu0 %v1074
    %v1222 = vpop.f32.mrb[0].mxu0
    %v1223 = vadd.f32 %v1098, %v1222
    %v1224 = vpop.f32.mrb[0].mxu0
    %v1225 = vpop.f32.mrb[0].mxu0
    %v1226 = vadd.f32 %v1098, %v1225
    %v1227 = vpop.f32.mrb[0].mxu0
    %1228 = vmatprep.mubr.bf16.mxu0 0
    %1229 = vmatmul.mubr.bf16.gmra.mrb[0].mxu0 %v1075
    %v1230 = vpop.f32.mrb[0].mxu0
    %v1231 = vadd.f32 %v1098, %v1230
    %v1232 = vpop.f32.mrb[0].mxu0
    %v1233 = vpop.f32.mrb[0].mxu0
    %v1234 = vadd.f32 %v1098, %v1233
    %v1235 = vpop.f32.mrb[0].mxu0
    %1236 = vmatprep.mubr.bf16.mxu0 0
    %1237 = vmatmul.mubr.bf16.gmra.mrb[0].mxu0 %v1076
    %v1238 = vpop.f32.mrb[0].mxu0
    %v1239 = vadd.f32 %v1098, %v1238
    %v1240 = vpop.f32.mrb[0].mxu0
    %v1241 = vpop.f32.mrb[0].mxu0
    %v1242 = vadd.f32 %v1098, %v1241
    %v1243 = vpop.f32.mrb[0].mxu0
    %1244 = vdwg.mxu0
    %v1245 = vmax.f32 %v1183, 0.0
    %v1246 = vmax.f32 %v1186, 0.0
    %v1247 = vmax.f32 %v1191, 0.0
    %v1248 = vmax.f32 %v1194, 0.0
    %v1249 = vmax.f32 %v1199, 0.0
    %v1250 = vmax.f32 %v1202, 0.0
    %v1251 = vmax.f32 %v1207, 0.0
    %v1252 = vmax.f32 %v1210, 0.0
    %v1253 = vmax.f32 %v1215, 0.0
    %v1254 = vmax.f32 %v1218, 0.0
    %v1255 = vmax.f32 %v1223, 0.0
    %v1256 = vmax.f32 %v1226, 0.0
    %v1257 = vmax.f32 %v1231, 0.0
    %v1258 = vmax.f32 %v1234, 0.0
    %v1259 = vmax.f32 %v1239, 0.0
    %v1260 = vmax.f32 %v1242, 0.0
    %v1261 = vpack.c.bf16 %v1246, %v1245
    %v1262 = vpack.c.bf16 %v1248, %v1247
    %v1263 = vpack.c.bf16 %v1250, %v1249
    %v1264 = vpack.c.bf16 %v1252, %v1251
    %v1265 = vpack.c.bf16 %v1254, %v1253
    %v1266 = vpack.c.bf16 %v1256, %v1255
    %v1267 = vpack.c.bf16 %v1258, %v1257
    %v1268 = vpack.c.bf16 %v1260, %v1259
    %v1269 = vld [vmem:[#allocation8] sm:$0xf]
    %v1270 = vld [vmem:[#allocation8 + $0x4] sm:$0xf]
    %v1271 = vld [vmem:[#allocation8 + $0x8] sm:$0xf]
    %v1272 = vld [vmem:[#allocation8 + $0xc] sm:$0xf]
    %v1273 = vld [vmem:[#allocation8 + $0x10] sm:$0xf]
    %v1274 = vld [vmem:[#allocation8 + $0x14] sm:$0xf]
    %v1275 = vld [vmem:[#allocation8 + $0x18] sm:$0xf]
    %v1276 = vld [vmem:[#allocation8 + $0x1c] sm:$0xf]
    %v1277 = vld [vmem:[#allocation8 + $0x20] sm:$0xf]
    %v1278 = vld [vmem:[#allocation8 + $0x24] sm:$0xf]
    %v1279 = vld [vmem:[#allocation8 + $0x28] sm:$0xf]
    %v1280 = vld [vmem:[#allocation8 + $0x2c] sm:$0xf]
    %v1281 = vld [vmem:[#allocation8 + $0x30] sm:$0xf]
    %v1282 = vld [vmem:[#allocation8 + $0x34] sm:$0xf]
    %v1283 = vld [vmem:[#allocation8 + $0x38] sm:$0xf]
    %v1284 = vld [vmem:[#allocation8 + $0x3c] sm:$0xf]
    %v1285 = vld [vmem:[%s6] sm:$0x1]
    %v1287 = vlaneseq
    %v1288 = vshrl.u32 %v1287, 7
    %v1289 = vsub.s32 0, %v1288
    %v1290 = vrot.slane %v1285, %v1289
    %v1308 = vunpack.c.l.b16 %v1269
    %v1309 = vunpack.c.l.b16 %v1270
    %v1310 = vunpack.c.l.b16 %v1271
    %v1311 = vunpack.c.l.b16 %v1272
    %v1312 = vunpack.c.l.b16 %v1273
    %v1313 = vunpack.c.l.b16 %v1274
    %v1314 = vunpack.c.l.b16 %v1275
    %v1315 = vunpack.c.l.b16 %v1276
    %v1316 = vunpack.c.l.b16 %v1277
    %v1317 = vunpack.c.l.b16 %v1278
    %v1318 = vunpack.c.l.b16 %v1279
    %v1319 = vunpack.c.l.b16 %v1280
    %v1320 = vunpack.c.l.b16 %v1281
    %v1321 = vunpack.c.l.b16 %v1282
    %v1322 = vunpack.c.l.b16 %v1283
    %v1323 = vunpack.c.l.b16 %v1284
    %v1324 = vpack.c.b16 %v1309, %v1308
    %v1325 = vpack.c.b16 %v1311, %v1310
    %v1326 = vpack.c.b16 %v1313, %v1312
    %v1327 = vpack.c.b16 %v1315, %v1314
    %v1328 = vpack.c.b16 %v1317, %v1316
    %v1329 = vpack.c.b16 %v1319, %v1318
    %v1330 = vpack.c.b16 %v1321, %v1320
    %v1331 = vpack.c.b16 %v1323, %v1322
    %1340 = vmatprep.subr.bf16.mxu0 0
    %1341 = vmatpush1.bf16.msra.mxu0 %v1324
    %1342 = vmatprep.subr.bf16.mxu0 0
    %1343 = vmatpush1.bf16.msra.mxu0 %v1325
    %1344 = vmatprep.subr.bf16.mxu0 0
    %1345 = vmatpush1.bf16.msra.mxu0 %v1326
    %1346 = vmatprep.subr.bf16.mxu0 0
    %1347 = vmatpush1.bf16.msra.mxu0 %v1327
    %1348 = vmatprep.subr.bf16.mxu0 0
    %1349 = vmatpush1.bf16.msra.mxu0 %v1328
    %1350 = vmatprep.subr.bf16.mxu0 0
    %1351 = vmatpush1.bf16.msra.mxu0 %v1329
    %1352 = vmatprep.subr.bf16.mxu0 0
    %1353 = vmatpush1.bf16.msra.mxu0 %v1330
    %1354 = vmatprep.subr.bf16.mxu0 0
    %1355 = vmatpush1.bf16.msra.mxu0 %v1331
    %1356 = vmatprep.subr.bf16.mxu0 0
    %1357 = vmatpush1.bf16.msra.mxu0 0
    %1358 = vmatprep.subr.bf16.mxu0 0
    %1359 = vmatpush1.bf16.msra.mxu0 0
    %1360 = vmatprep.subr.bf16.mxu0 0
    %1361 = vmatpush1.bf16.msra.mxu0 0
    %1362 = vmatprep.subr.bf16.mxu0 0
    %1363 = vmatpush1.bf16.msra.mxu0 0
    %1364 = vmatprep.subr.bf16.mxu0 0
    %1365 = vmatpush1.bf16.msra.mxu0 0
    %1366 = vmatprep.subr.bf16.mxu0 0
    %1367 = vmatpush1.bf16.msra.mxu0 0
    %1368 = vmatprep.subr.bf16.mxu0 0
    %1369 = vmatpush1.bf16.msra.mxu0 0
    %1370 = vmatprep.subr.bf16.mxu0 0
    %1371 = vmatpush1.bf16.msra.mxu0 0
    %1372 = vmatprep.mubr.bf16.mxu0 0
    %1373 = vmatmul.mubr.bf16.gmra.mrb[0].mxu0 %v1261
    %v1374 = vpop.f32.mrb[0].mxu0
    %v1375 = vadd.f32 %v1290, %v1374
    %v1376 = vpop.f32.mrb[0].mxu0
    %v1377 = vpop.f32.mrb[0].mxu0
    %v1378 = vadd.f32 %v1290, %v1377
    %v1379 = vpop.f32.mrb[0].mxu0
    %1380 = vmatprep.mubr.bf16.mxu0 0
    %1381 = vmatmul.mubr.bf16.gmra.mrb[0].mxu0 %v1262
    %v1382 = vpop.f32.mrb[0].mxu0
    %v1383 = vadd.f32 %v1290, %v1382
    %v1384 = vpop.f32.mrb[0].mxu0
    %v1385 = vpop.f32.mrb[0].mxu0
    %v1386 = vadd.f32 %v1290, %v1385
    %v1387 = vpop.f32.mrb[0].mxu0
    %1388 = vmatprep.mubr.bf16.mxu0 0
    %1389 = vmatmul.mubr.bf16.gmra.mrb[0].mxu0 %v1263
    %v1390 = vpop.f32.mrb[0].mxu0
    %v1391 = vadd.f32 %v1290, %v1390
    %v1392 = vpop.f32.mrb[0].mxu0
    %v1393 = vpop.f32.mrb[0].mxu0
    %v1394 = vadd.f32 %v1290, %v1393
    %v1395 = vpop.f32.mrb[0].mxu0
    %1396 = vmatprep.mubr.bf16.mxu0 0
    %1397 = vmatmul.mubr.bf16.gmra.mrb[0].mxu0 %v1264
    %v1398 = vpop.f32.mrb[0].mxu0
    %v1399 = vadd.f32 %v1290, %v1398
    %v1400 = vpop.f32.mrb[0].mxu0
    %v1401 = vpop.f32.mrb[0].mxu0
    %v1402 = vadd.f32 %v1290, %v1401
    %v1403 = vpop.f32.mrb[0].mxu0
    %1404 = vmatprep.mubr.bf16.mxu0 0
    %1405 = vmatmul.mubr.bf16.gmra.mrb[0].mxu0 %v1265
    %v1406 = vpop.f32.mrb[0].mxu0
    %v1407 = vadd.f32 %v1290, %v1406
    %v1408 = vpop.f32.mrb[0].mxu0
    %v1409 = vpop.f32.mrb[0].mxu0
    %v1410 = vadd.f32 %v1290, %v1409
    %v1411 = vpop.f32.mrb[0].mxu0
    %1412 = vmatprep.mubr.bf16.mxu0 0
    %1413 = vmatmul.mubr.bf16.gmra.mrb[0].mxu0 %v1266
    %v1414 = vpop.f32.mrb[0].mxu0
    %v1415 = vadd.f32 %v1290, %v1414
    %v1416 = vpop.f32.mrb[0].mxu0
    %v1417 = vpop.f32.mrb[0].mxu0
    %v1418 = vadd.f32 %v1290, %v1417
    %v1419 = vpop.f32.mrb[0].mxu0
    %1420 = vmatprep.mubr.bf16.mxu0 0
    %1421 = vmatmul.mubr.bf16.gmra.mrb[0].mxu0 %v1267
    %v1422 = vpop.f32.mrb[0].mxu0
    %v1423 = vadd.f32 %v1290, %v1422
    %v1424 = vpop.f32.mrb[0].mxu0
    %v1425 = vpop.f32.mrb[0].mxu0
    %v1426 = vadd.f32 %v1290, %v1425
    %v1427 = vpop.f32.mrb[0].mxu0
    %1428 = vmatprep.mubr.bf16.mxu0 0
    %1429 = vmatmul.mubr.bf16.gmra.mrb[0].mxu0 %v1268
    %v1430 = vpop.f32.mrb[0].mxu0
    %v1431 = vadd.f32 %v1290, %v1430
    %v1432 = vpop.f32.mrb[0].mxu0
    %v1433 = vpop.f32.mrb[0].mxu0
    %v1434 = vadd.f32 %v1290, %v1433
    %v1435 = vpop.f32.mrb[0].mxu0
    %1436 = vdwg.mxu0
    %1437 = vst [vmem:[#allocation10] sm:$0xff] %v1375
    %1438 = vst [vmem:[#allocation10 + $0x8] sm:$0xff] %v1378
    %1439 = vst [vmem:[#allocation10 + $0x10] sm:$0xff] %v1383
    %1440 = vst [vmem:[#allocation10 + $0x18] sm:$0xff] %v1386
    %1441 = vst [vmem:[#allocation10 + $0x20] sm:$0xff] %v1391
    %1442 = vst [vmem:[#allocation10 + $0x28] sm:$0xff] %v1394
    %1443 = vst [vmem:[#allocation10 + $0x30] sm:$0xff] %v1399
    %1444 = vst [vmem:[#allocation10 + $0x38] sm:$0xff] %v1402
    %1445 = vst [vmem:[#allocation10 + $0x40] sm:$0xff] %v1407
    %1446 = vst [vmem:[#allocation10 + $0x48] sm:$0xff] %v1410
    %1447 = vst [vmem:[#allocation10 + $0x50] sm:$0xff] %v1415
    %1448 = vst [vmem:[#allocation10 + $0x58] sm:$0xff] %v1418
    %1449 = vst [vmem:[#allocation10 + $0x60] sm:$0xff] %v1423
    %1450 = vst [vmem:[#allocation10 + $0x68] sm:$0xff] %v1426
    %1451 = vst [vmem:[#allocation10 + $0x70] sm:$0xff] %v1431
    %1452 = vst [vmem:[#allocation10 + $0x78] sm:$0xff] %v1434
    // Predicated region
    $region46: #{tpu_custom_call.1} parent=1 // pred_check
      _
    $region47: #{tpu_custom_call.1} parent=1 // pred_check_branch
      %1454 = sbr.rel (0) target = $region49
    $region48: #{tpu_custom_call.1} parent=1 // pred_region
      %s1456 = ssub.s32 2048, 2048
      %1457 = vsyncadd [#allocation4], %s1456
      %s1458 = sshll.u32 [#allocation10], 4
      %s1459 = int_to_ptr.vmem [resolvable:$true] %s1458
      %1464 = dma.vmem_to_hbm [thread:$0]  %s1459, 2048, %s7, [#allocation4], 128, 128, 8
    $region49: #{tpu_custom_call.1} parent=1 // pred_fallthru
      _
    // Predicated region
    $region50: #{tpu_custom_call.1} parent=1 // pred_check
      _
    $region51: #{tpu_custom_call.1} parent=1 // pred_check_branch
      %1466 = sbr.rel (0) target = $region53
    $region52: #{tpu_custom_call.1} parent=1 // pred_region
      %1467 = dma.done [#allocation4], 2048
    $region53: #{tpu_custom_call.1} parent=1 // pred_fallthru
      _
    %1468 = vsyncpa [#allocation3], 1
    %1469 = vsyncpa [#allocation6], 1
    %1470 = vsyncpa [#allocation9], 1
    %1471 = vsyncpa [#allocation4], 1

</llo_original>
